<compile_context>
chip_gen: v5e
topology: v5e:2x2
jax: 0.10.0
libtpu: 0.0.40
codegen_flags: <defaults>
</compile_context>

<pallas_src>
import jax
import jax.numpy as jnp
from jax.experimental import pallas as pl
from jax.experimental.pallas import tpu as pltpu


def _prenorm_kernel(eps):
    def kernel(x_ref, g_ref, b_ref, wt_ref, fb_ref, o_ref):
        # x block: (C, T), T a multiple of 128 (lane axis). Stats in f32.
        x = x_ref[...].astype(jnp.float32)
        mean = jnp.mean(x, axis=0, keepdims=True)            # (1, T)
        xc = x - mean                                        # reused (var + norm)
        var = jnp.mean(xc * xc, axis=0, keepdims=True)       # unbiased=False
        # eps is added to std (matches the torch module); reciprocal on the EUP.
        inv = pl.reciprocal(jnp.sqrt(var) + eps, approx=True)
        normed = (xc * inv * g_ref[...].astype(jnp.float32)
                  + b_ref[...].astype(jnp.float32))
        w = wt_ref[...]                                      # (C_out, C_in)
        if w.dtype != jnp.float32:                           # bf16 MXU path
            normed = normed.astype(w.dtype)
        y = jnp.dot(w, normed, preferred_element_type=jnp.float32)   # (C_out, T)
        y = y + fb_ref[...].astype(jnp.float32)
        o_ref[...] = y.astype(o_ref.dtype)
    return kernel


def _pick_tile_hw(hw, c_in, c_out, vmem_budget_bytes):
    """Largest 128-multiple column tile s.t. double-buffered in/out + weight fit."""
    per_col = 2 * (c_in + c_out) * 4                    # double-buffered x & y cols
    fixed = c_in * c_out * 4 + 4 * (c_in + c_out) * 4 + (64 << 10)
    max_cols = max(128, (vmem_budget_bytes - fixed) // per_col)
    tile = max(128, (int(min(2048, max_cols)) // 128) * 128)
    hw_pad = pl.cdiv(hw, 128) * 128
    if hw_pad <= tile:
        return hw_pad
    # Prefer a tile that evenly divides the 128-aligned extent (minimal padding).
    for cand in range(tile, 127, -128):
        if hw_pad % cand == 0:
            return cand
    return tile


def prenorm_fn(x_nchw, g, b, fn_w, fn_b, *, eps=1e-5,
               vmem_limit_bytes=32 * 1024 * 1024):
    """PreNorm forward. x_nchw: (N,C,H,W); g,b: (C,); fn_w: (C_in,C_out); fn_b: (C_out,)."""
    N, C, H, W = x_nchw.shape
    C_out = fn_w.shape[1]
    HW = H * W

    # Pure reshape (no transpose / no extra HBM pass): NCHW kept.
    x3 = x_nchw.reshape(N, C, HW)

    tile_hw = _pick_tile_hw(HW, C, C_out, vmem_budget_bytes=(3 * vmem_limit_bytes) // 4)
    hw_pad = pl.cdiv(HW, tile_hw) * tile_hw
    if hw_pad != HW:
        x3 = jnp.pad(x3, ((0, 0), (0, 0), (0, hw_pad - HW)))
    num_col_tiles = hw_pad // tile_hw

    wt = jnp.transpose(fn_w)                      # (C_out, C_in): tiny, resident
    if x_nchw.dtype == jnp.bfloat16:
        wt = wt.astype(jnp.bfloat16)              # halve resident weight, bf16 MXU
    g2 = g.reshape(C, 1)
    b2 = b.reshape(C, 1)
    fb2 = fn_b.reshape(C_out, 1)

    itemsize = jnp.dtype(x_nchw.dtype).itemsize
    cost = pl.CostEstimate(
        flops=int(2 * N * hw_pad * C * C_out + 8 * N * hw_pad * C),
        transcendentals=int(2 * N * hw_pad),
        bytes_accessed=int(N * hw_pad * (C + C_out) * itemsize + C * C_out * 4),
    )

    out3 = pl.pallas_call(
        _prenorm_kernel(eps),
        out_shape=jax.ShapeDtypeStruct((N, C_out, hw_pad), x_nchw.dtype),
        grid_spec=pltpu.PrefetchScalarGridSpec(
            num_scalar_prefetch=0,
            grid=(N, num_col_tiles),
            in_specs=[
                pl.BlockSpec((None, C, tile_hw), lambda n, j: (n, 0, j)),   # x
                pl.BlockSpec((C, 1), lambda n, j: (0, 0)),                  # g
                pl.BlockSpec((C, 1), lambda n, j: (0, 0)),                  # b
                pl.BlockSpec((C_out, C), lambda n, j: (0, 0)),              # fn_w.T
                pl.BlockSpec((C_out, 1), lambda n, j: (0, 0)),              # fn_b
            ],
            out_specs=pl.BlockSpec((None, C_out, tile_hw), lambda n, j: (n, 0, j)),
        ),
        compiler_params=pltpu.CompilerParams(
            dimension_semantics=("parallel", "parallel"),
            vmem_limit_bytes=vmem_limit_bytes,
        ),
        cost_estimate=cost,
    )(x3, g2, b2, wt, fb2)

    if hw_pad != HW:
        out3 = out3[:, :, :HW]
    return out3.reshape(N, C_out, H, W)


def prenorm_reference(x_nchw, g, b, fn_w, fn_b, eps=1e-5):
    """Pure-JAX reference matching the PyTorch PreNorm(LayerNorm, 1x1-conv fn)."""
    x = x_nchw.astype(jnp.float32)
    mean = jnp.mean(x, axis=1, keepdims=True)
    var = jnp.mean((x - mean) ** 2, axis=1, keepdims=True)   # unbiased=False
    std = jnp.sqrt(var)
    normed = (x - mean) / (std + eps) * g.reshape(1, -1, 1, 1) + b.reshape(1, -1, 1, 1)
    y = jnp.einsum("nchw,cd->ndhw", normed, fn_w) + fn_b.reshape(1, -1, 1, 1)
    return y.astype(x_nchw.dtype)


if __name__ == "__main__":
    key = jax.random.PRNGKey(0)
    N, C, H, W = 2, 4, 16, 16

    kx, kw, kb = jax.random.split(key, 3)
    x = jax.random.normal(kx, (N, C, H, W), dtype=jnp.float32)

    # LayerNorm parameters (as in __init__: ones / zeros)
    g = jnp.ones((C,), dtype=jnp.float32)
    b = jnp.zeros((C,), dtype=jnp.float32)

    # Deterministic synthetic params for fn (pointwise 1x1 conv, dim -> dim)
    fn_w = 0.1 * jax.random.normal(kw, (C, C), dtype=jnp.float32)
    fn_b = 0.01 * jax.random.normal(kb, (C,), dtype=jnp.float32)

    out = jax.block_until_ready(prenorm_fn(x, g, b, fn_w, fn_b))
    ref = prenorm_reference(x, g, b, fn_w, fn_b)

    assert out.shape == (N, C, H, W), f"bad shape {out.shape}"
    # Tolerance accounts for the EUP approximate reciprocal (pl.reciprocal approx=True).
    assert jnp.allclose(out, ref, atol=1e-2, rtol=1e-2), "mismatch vs reference"

    print("KERNEL_OK")
</pallas_src>

<mosaic_0001>
module attributes {stable_mosaic.version = 11 : i64} {
  func.func @kernel(%arg0: i32, %arg1: i32, %arg2: memref<1x4x256xf32, #tpu.memory_space<vmem>>, %arg3: memref<4x1xf32, #tpu.memory_space<vmem>>, %arg4: memref<4x1xf32, #tpu.memory_space<vmem>>, %arg5: memref<4x4xf32, #tpu.memory_space<vmem>>, %arg6: memref<4x1xf32, #tpu.memory_space<vmem>>, %arg7: memref<1x4x256xf32, #tpu.memory_space<vmem>>) attributes {dimension_semantics = [#tpu.dimension_semantics<parallel>, #tpu.dimension_semantics<parallel>], iteration_bounds = array<i64: 2, 1>, scalar_prefetch = 0 : i64, scratch_operands = 0 : i64, tpu.core_type = #tpu.core_type<tc>, window_params = [{transform_indices = @transform_0, window_bounds = array<i64: 1, 4, 256>}, {pipeline_mode = #tpu.pipeline_mode<synchronous>, transform_indices = @transform_1, window_bounds = array<i64: 4, 1>}, {pipeline_mode = #tpu.pipeline_mode<synchronous>, transform_indices = @transform_2, window_bounds = array<i64: 4, 1>}, {pipeline_mode = #tpu.pipeline_mode<synchronous>, transform_indices = @transform_3, window_bounds = array<i64: 4, 4>}, {pipeline_mode = #tpu.pipeline_mode<synchronous>, transform_indices = @transform_4, window_bounds = array<i64: 4, 1>}, {transform_indices = @transform_5, window_bounds = array<i64: 1, 4, 256>}]} {
    %c0 = arith.constant 0 : index
    %c0_0 = arith.constant 0 : index
    %c0_1 = arith.constant 0 : index
    %0 = vector.load %arg2[%c0, %c0_0, %c0_1] : memref<1x4x256xf32, #tpu.memory_space<vmem>>, vector<1x4x256xf32>
    %1 = vector.shape_cast %0 : vector<1x4x256xf32> to vector<4x256xf32>
    %cst = arith.constant dense<0.000000e+00> : vector<256xf32>
    %2 = vector.multi_reduction <add>, %1, %cst [0] : vector<4x256xf32> to vector<256xf32>
    %3 = vector.shape_cast %2 : vector<256xf32> to vector<1x256xf32>
    %cst_2 = arith.constant 4.000000e+00 : f32
    %4 = vector.broadcast %cst_2 : f32 to vector<1x256xf32>
    %5 = arith.divf %3, %4 : vector<1x256xf32>
    %6 = vector.broadcast %5 : vector<1x256xf32> to vector<4x256xf32>
    %7 = arith.subf %1, %6 : vector<4x256xf32>
    %8 = arith.mulf %7, %7 : vector<4x256xf32>
    %cst_3 = arith.constant dense<0.000000e+00> : vector<256xf32>
    %9 = vector.multi_reduction <add>, %8, %cst_3 [0] : vector<4x256xf32> to vector<256xf32>
    %10 = vector.shape_cast %9 : vector<256xf32> to vector<1x256xf32>
    %cst_4 = arith.constant 4.000000e+00 : f32
    %11 = vector.broadcast %cst_4 : f32 to vector<1x256xf32>
    %12 = arith.divf %10, %11 : vector<1x256xf32>
    %13 = math.sqrt %12 : vector<1x256xf32>
    %cst_5 = arith.constant 9.99999974E-6 : f32
    %14 = vector.broadcast %cst_5 : f32 to vector<1x256xf32>
    %15 = arith.addf %13, %14 : vector<1x256xf32>
    %16 = tpu.reciprocal %15 {approx = true} : vector<1x256xf32> -> vector<1x256xf32>
    %17 = vector.broadcast %16 : vector<1x256xf32> to vector<4x256xf32>
    %18 = arith.mulf %7, %17 : vector<4x256xf32>
    %c0_6 = arith.constant 0 : index
    %c0_7 = arith.constant 0 : index
    %19 = vector.load %arg3[%c0_6, %c0_7] : memref<4x1xf32, #tpu.memory_space<vmem>>, vector<4x1xf32>
    %20 = vector.broadcast %19 : vector<4x1xf32> to vector<4x256xf32>
    %21 = arith.mulf %18, %20 : vector<4x256xf32>
    %c0_8 = arith.constant 0 : index
    %c0_9 = arith.constant 0 : index
    %22 = vector.load %arg4[%c0_8, %c0_9] : memref<4x1xf32, #tpu.memory_space<vmem>>, vector<4x1xf32>
    %23 = vector.broadcast %22 : vector<4x1xf32> to vector<4x256xf32>
    %24 = arith.addf %21, %23 : vector<4x256xf32>
    %c0_10 = arith.constant 0 : index
    %c0_11 = arith.constant 0 : index
    %25 = vector.load %arg5[%c0_10, %c0_11] : memref<4x4xf32, #tpu.memory_space<vmem>>, vector<4x4xf32>
    %cst_12 = arith.constant dense<0.000000e+00> : vector<4x256xf32>
    %26 = tpu.matmul %25, %24, %cst_12 {dimension_numbers = #tpu.dot_dimension_numbers<[1], [0], [0], [1], [0, 0, 1, 1], [], []>} : vector<4x4xf32>, vector<4x256xf32>, vector<4x256xf32> -> vector<4x256xf32>
    %c0_13 = arith.constant 0 : index
    %c0_14 = arith.constant 0 : index
    %27 = vector.load %arg6[%c0_13, %c0_14] : memref<4x1xf32, #tpu.memory_space<vmem>>, vector<4x1xf32>
    %28 = vector.broadcast %27 : vector<4x1xf32> to vector<4x256xf32>
    %29 = arith.addf %26, %28 : vector<4x256xf32>
    %c0_15 = arith.constant 0 : index
    %c0_16 = arith.constant 0 : index
    %c0_17 = arith.constant 0 : index
    %30 = vector.load %arg7[%c0_15, %c0_16, %c0_17] : memref<1x4x256xf32, #tpu.memory_space<vmem>>, vector<1x4x256xf32>
    %31 = vector.shape_cast %30 : vector<1x4x256xf32> to vector<4x256xf32>
    %32 = vector.shape_cast %29 : vector<4x256xf32> to vector<1x4x256xf32>
    tpu.vector_store %arg7[%c0_15, %c0_16, %c0_17], %32 {strides = array<i32>} : memref<1x4x256xf32, #tpu.memory_space<vmem>>, vector<1x4x256xf32>,
    return
  }
  func.func @transform_0(%arg0: i32, %arg1: i32) -> (i32, i32, i32) {
    %c0_i32 = arith.constant 0 : i32
    %c0_i32_0 = arith.constant 0 : i32
    return %arg0, %c0_i32, %arg1 : i32, i32, i32
  }
  func.func @transform_1(%arg0: i32, %arg1: i32) -> (i32, i32) {
    %c0_i32 = arith.constant 0 : i32
    %c0_i32_0 = arith.constant 0 : i32
    %c0_i32_1 = arith.constant 0 : i32
    return %c0_i32, %c0_i32_0 : i32, i32
  }
  func.func @transform_2(%arg0: i32, %arg1: i32) -> (i32, i32) {
    %c0_i32 = arith.constant 0 : i32
    %c0_i32_0 = arith.constant 0 : i32
    %c0_i32_1 = arith.constant 0 : i32
    return %c0_i32, %c0_i32_0 : i32, i32
  }
  func.func @transform_3(%arg0: i32, %arg1: i32) -> (i32, i32) {
    %c0_i32 = arith.constant 0 : i32
    %c0_i32_0 = arith.constant 0 : i32
    %c0_i32_1 = arith.constant 0 : i32
    return %c0_i32, %c0_i32_0 : i32, i32
  }
  func.func @transform_4(%arg0: i32, %arg1: i32) -> (i32, i32) {
    %c0_i32 = arith.constant 0 : i32
    %c0_i32_0 = arith.constant 0 : i32
    %c0_i32_1 = arith.constant 0 : i32
    return %c0_i32, %c0_i32_0 : i32, i32
  }
  func.func @transform_5(%arg0: i32, %arg1: i32) -> (i32, i32, i32) {
    %c0_i32 = arith.constant 0 : i32
    %c0_i32_0 = arith.constant 0 : i32
    return %arg0, %c0_i32, %arg1 : i32, i32, i32
  }
}

</mosaic_0001>

<llo_original>
// kernel: tpu_custom_call.1
$region0: #{tpu_custom_call.1}
  #allocation0 [shape = 'u32[]', space=smem, size = 0x4, offset = 0x4, fixed_abs, tag = 'smem constant byte address 0x4 - core index']
  #allocation1 [shape = 'u32[72,128]{1,0:T(1,128)}', space=vmem, size = 0x9000, scoped, tag = 'internal scratch']
  %s0 = inlined_call_operand.hbm [shape: f32[2,4,256], index: 0, kind: input, shape index: {}]
  %s1 = inlined_call_operand.vmem [shape: f32[4,1], index: 1, kind: input, shape index: {}]
  %s2 = inlined_call_operand.vmem [shape: f32[4,1], index: 2, kind: input, shape index: {}]
  %s3 = inlined_call_operand.vmem [shape: f32[4,4], index: 3, kind: input, shape index: {}]
  %s4 = inlined_call_operand.vmem [shape: f32[4,1], index: 4, kind: input, shape index: {}]
  %s5 = inlined_call_operand.hbm [shape: f32[2,4,256], index: 5, kind: output, shape index: {}]
  %s6 = sld [smem:[#allocation0]]
  $region57: #{tpu_custom_call.1} parent=0
    _
  %s8 = ssub.s32 1, %s6
  %s9 = scalar_select 0, %s8, %s6
  $region1: #{tpu_custom_call.1} parent=0
    #allocation2 [shape = 'u8[8192]{0}', space=vmem, size = 0x2000, scoped, tag = 'input window, operand 0']
    #allocation3 [shape = 's32[2]{0}', space=sflag, size = 0x8, scoped, tag = 'scoped memory for tpu_custom_call.1']
    #allocation4 [shape = 's32[2]{0}', space=sflag, size = 0x8, scoped, tag = 'scoped memory for tpu_custom_call.1']
    #allocation5 [shape = 'u8[8192]{0}', space=vmem, size = 0x2000, scoped, tag = 'output window, operand 0']
    %10 = vsyncpa [#allocation3], 0
    %s11 = scalar_lea.sflag [#allocation3], 1
    %12 = vsyncpa %s11, 0
    %13 = vsyncpa [#allocation4], 0
    %s14 = scalar_lea.sflag [#allocation4], 1
    %15 = vsyncpa %s14, 0
    loop: start=0, step=1, limit=4
    $region2: #{tpu_custom_call.1} parent=1 // loop_pre_header
      _
    $region3: #{tpu_custom_call.1} parent=1 // loop_header
      %s17 = sphi 0, %s21
      %p18 = scmp.ge.s32.totalorder %s17, 4
      %s24 = sphi 0, %s36
      %s25 = sphi 0, %s32
      %s26 = sphi 0, %s24
      %s27 = sphi 0, %s25
      %s28 = sphi 0, %s26
      %s29 = sphi 0, %s27
      %s41 = sphi 0, %s43
      %s44 = sphi 0, %s41
      %s45 = sphi 0, %s44
      %s61 = sphi 0, %s45
      %s65 = sphi 0, %s65
      %s67 = sphi 0, %s65
      %s68 = sphi 0, %s67
      %s82 = sphi 0, %s68
      %s86 = sphi 0, %s86
      %s88 = sphi 0, %s86
      %s89 = sphi 0, %s88
      %s103 = sphi 0, %s89
      %s107 = sphi 0, %s107
      %s109 = sphi 0, %s107
      %s110 = sphi 0, %s109
      %s124 = sphi 0, %s110
      %s128 = sphi 0, %s128
      %s130 = sphi 0, %s128
      %s131 = sphi 0, %s130
      %s145 = sphi 0, %s131
      %s153 = sphi 0, %s155
      %s156 = sphi 0, %s153
      %s157 = sphi 0, %s156
      %s173 = sphi 0, %s157
    $region4: #{tpu_custom_call.1} parent=1 // loop_header_branch
      %20 = sbr.rel (%p18) target = $region8
    $region5: #{tpu_custom_call.1} parent=1 // loop_body
      %s22 = ssub.s32 %s17, 1
      %s23 = ssub.s32 %s17, 2
      %s30 = sadd.s32 1, %s25
      %p31 = scmp.ge.s32.totalorder %s30, 1
      %s32 = scalar_select %p31, 0, %s30
      %s33 = sadd.s32 1, %s24
      %s34 = scalar_select %p31, %s33, %s24
      %p35 = scmp.ge.s32.totalorder %s34, 2
      %s36 = scalar_select %p35, 0, %s34
      %s37 = ssub.s32 %s24, %s36
      %s38 = ssub.s32 %s25, %s32
      %s39 = sor.u32 %s37, %s38
      %p40 = scmp.eq.s32.totalorder %s39, 0
      %s42 = sadd.s32 %s41, 1
      %s43 = scalar_select %p40, %s41, %s42
      %p46 = pneg %p40
      %p47 = scmp.eq.s32.totalorder %s17, 1
      %p48 = por %p46, %p47
      %p49 = scmp.ne.s32.totalorder %s41, %s44
      %p50 = scmp.eq.s32.totalorder %s17, 0
      %p51 = por %p49, %p50
      %p52 = scmp.ne.s32.totalorder %s41, %s44
      %p53 = scmp.eq.s32.totalorder %s22, 1
      %p54 = por %p52, %p53
      %p55 = scmp.ne.s32.totalorder %s44, %s45
      %p56 = scmp.eq.s32.totalorder %s22, 0
      %p57 = por %p55, %p56
      %p58 = scmp.ne.s32.totalorder %s44, %s45
      %p59 = scmp.eq.s32.totalorder %s23, 1
      %p60 = por %p58, %p59
      %p62 = scmp.ne.s32.totalorder %s45, %s61
      %p63 = scmp.eq.s32.totalorder %s23, 0
      %p64 = por %p62, %p63
      %s66 = sadd.s32 %s65, 1
      %p69 = scmp.eq.s32.totalorder %s17, 1
      %p70 = scmp.ne.s32.totalorder %s65, %s67
      %p71 = scmp.eq.s32.totalorder %s17, 0
      %p72 = por %p70, %p71
      %p73 = scmp.ne.s32.totalorder %s65, %s67
      %p74 = scmp.eq.s32.totalorder %s22, 1
      %p75 = por %p73, %p74
      %p76 = scmp.ne.s32.totalorder %s67, %s68
      %p77 = scmp.eq.s32.totalorder %s22, 0
      %p78 = por %p76, %p77
      %p79 = scmp.ne.s32.totalorder %s67, %s68
      %p80 = scmp.eq.s32.totalorder %s23, 1
      %p81 = por %p79, %p80
      %p83 = scmp.ne.s32.totalorder %s68, %s82
      %p84 = scmp.eq.s32.totalorder %s23, 0
      %p85 = por %p83, %p84
      %s87 = sadd.s32 %s86, 1
      %p90 = scmp.eq.s32.totalorder %s17, 1
      %p91 = scmp.ne.s32.totalorder %s86, %s88
      %p92 = scmp.eq.s32.totalorder %s17, 0
      %p93 = por %p91, %p92
      %p94 = scmp.ne.s32.totalorder %s86, %s88
      %p95 = scmp.eq.s32.totalorder %s22, 1
      %p96 = por %p94, %p95
      %p97 = scmp.ne.s32.totalorder %s88, %s89
      %p98 = scmp.eq.s32.totalorder %s22, 0
      %p99 = por %p97, %p98
      %p100 = scmp.ne.s32.totalorder %s88, %s89
      %p101 = scmp.eq.s32.totalorder %s23, 1
      %p102 = por %p100, %p101
      %p104 = scmp.ne.s32.totalorder %s89, %s103
      %p105 = scmp.eq.s32.totalorder %s23, 0
      %p106 = por %p104, %p105
      %s108 = sadd.s32 %s107, 1
      %p111 = scmp.eq.s32.totalorder %s17, 1
      %p112 = scmp.ne.s32.totalorder %s107, %s109
      %p113 = scmp.eq.s32.totalorder %s17, 0
      %p114 = por %p112, %p113
      %p115 = scmp.ne.s32.totalorder %s107, %s109
      %p116 = scmp.eq.s32.totalorder %s22, 1
      %p117 = por %p115, %p116
      %p118 = scmp.ne.s32.totalorder %s109, %s110
      %p119 = scmp.eq.s32.totalorder %s22, 0
      %p120 = por %p118, %p119
      %p121 = scmp.ne.s32.totalorder %s109, %s110
      %p122 = scmp.eq.s32.totalorder %s23, 1
      %p123 = por %p121, %p122
      %p125 = scmp.ne.s32.totalorder %s110, %s124
      %p126 = scmp.eq.s32.totalorder %s23, 0
      %p127 = por %p125, %p126
      %s129 = sadd.s32 %s128, 1
      %p132 = scmp.eq.s32.totalorder %s17, 1
      %p133 = scmp.ne.s32.totalorder %s128, %s130
      %p134 = scmp.eq.s32.totalorder %s17, 0
      %p135 = por %p133, %p134
      %p136 = scmp.ne.s32.totalorder %s128, %s130
      %p137 = scmp.eq.s32.totalorder %s22, 1
      %p138 = por %p136, %p137
      %p139 = scmp.ne.s32.totalorder %s130, %s131
      %p140 = scmp.eq.s32.totalorder %s22, 0
      %p141 = por %p139, %p140
      %p142 = scmp.ne.s32.totalorder %s130, %s131
      %p143 = scmp.eq.s32.totalorder %s23, 1
      %p144 = por %p142, %p143
      %p146 = scmp.ne.s32.totalorder %s131, %s145
      %p147 = scmp.eq.s32.totalorder %s23, 0
      %p148 = por %p146, %p147
      %s149 = ssub.s32 %s24, %s36
      %s150 = ssub.s32 %s25, %s32
      %s151 = sor.u32 %s149, %s150
      %p152 = scmp.eq.s32.totalorder %s151, 0
      %s154 = sadd.s32 %s153, 1
      %s155 = scalar_select %p152, %s153, %s154
      %p158 = pneg %p152
      %p159 = scmp.eq.s32.totalorder %s17, 1
      %p160 = por %p158, %p159
      %p161 = scmp.ne.s32.totalorder %s153, %s156
      %p162 = scmp.eq.s32.totalorder %s17, 0
      %p163 = por %p161, %p162
      %p164 = scmp.ne.s32.totalorder %s153, %s156
      %p165 = scmp.eq.s32.totalorder %s22, 1
      %p166 = por %p164, %p165
      %p167 = scmp.ne.s32.totalorder %s156, %s157
      %p168 = scmp.eq.s32.totalorder %s22, 0
      %p169 = por %p167, %p168
      %p170 = scmp.ne.s32.totalorder %s156, %s157
      %p171 = scmp.eq.s32.totalorder %s23, 1
      %p172 = por %p170, %p171
      %p174 = scmp.ne.s32.totalorder %s157, %s173
      %p175 = scmp.eq.s32.totalorder %s23, 0
      %p176 = por %p174, %p175
      %p177 = scmp.le.s32.totalorder 1, %s17
      %p178 = scmp.lt.s32.totalorder %s17, 3
      %p179 = pnand %p177, %p178
      %p180 = pneg %p179
      // Predicated region
      $region9: #{tpu_custom_call.1} parent=5 // pred_check
        _
      $region10: #{tpu_custom_call.1} parent=5 // pred_check_branch
        %182 = sbr.rel (%p179) target = $region12
      $region11: #{tpu_custom_call.1} parent=5 // pred_region
        %s183 = ssub.s32 %s17, 1
        // Predicated region
        $region13: #{tpu_custom_call.1} parent=11 // pred_check
          %p184 = pneg %p78
        $region14: #{tpu_custom_call.1} parent=11 // pred_check_branch
          %186 = sbr.rel (%p184) target = $region16
        $region15: #{tpu_custom_call.1} parent=11 // pred_region
          _
        $region16: #{tpu_custom_call.1} parent=11 // pred_fallthru
          _
        // Predicated region
        $region17: #{tpu_custom_call.1} parent=11 // pred_check
          %p187 = pneg %p99
        $region18: #{tpu_custom_call.1} parent=11 // pred_check_branch
          %189 = sbr.rel (%p187) target = $region20
        $region19: #{tpu_custom_call.1} parent=11 // pred_region
          _
        $region20: #{tpu_custom_call.1} parent=11 // pred_fallthru
          _
        // Predicated region
        $region21: #{tpu_custom_call.1} parent=11 // pred_check
          %p190 = pneg %p120
        $region22: #{tpu_custom_call.1} parent=11 // pred_check_branch
          %192 = sbr.rel (%p190) target = $region24
        $region23: #{tpu_custom_call.1} parent=11 // pred_region
          _
        $region24: #{tpu_custom_call.1} parent=11 // pred_fallthru
          _
        // Predicated region
        $region25: #{tpu_custom_call.1} parent=11 // pred_check
          %p193 = pneg %p141
        $region26: #{tpu_custom_call.1} parent=11 // pred_check_branch
          %195 = sbr.rel (%p193) target = $region28
        $region27: #{tpu_custom_call.1} parent=11 // pred_region
          _
        $region28: #{tpu_custom_call.1} parent=11 // pred_fallthru
          _
      $region12: #{tpu_custom_call.1} parent=5 // pred_fallthru
        _
      %p196 = scmp.lt.s32.totalorder %s17, 2
      // Predicated region
      $region29: #{tpu_custom_call.1} parent=5 // pred_check
        %p197 = pneg %p196
      $region30: #{tpu_custom_call.1} parent=5 // pred_check_branch
        %199 = sbr.rel (%p197) target = $region32
      $region31: #{tpu_custom_call.1} parent=5 // pred_region
        // Predicated region
        $region33: #{tpu_custom_call.1} parent=31 // pred_check
          %p200 = pneg %p51
        $region34: #{tpu_custom_call.1} parent=31 // pred_check_branch
          %202 = sbr.rel (%p200) target = $region36
        $region35: #{tpu_custom_call.1} parent=31 // pred_region
          %s203 = sand.u32 %s41, 1
          %s204 = scalar_lea.sflag [#allocation3], %s203
          %s205 = sand.u32 %s41, 1
          %s206 = smul.addr %s205, 8
          %s207 = scalar_lea.vmem [#allocation2], %s206
          %s208 = smul.u32 2, %s25
          %210 = vsyncadd %s204, 0
          %s211 = smul.addr %s24, 2
          %s212 = sadd.s32 %s208, %s211
          %s213 = smul.addr %s212, 4
          %s214 = scalar_lea.hbm %s0, %s213
          %s216 = sshll.u32 %s214, 4
          %s217 = int_to_ptr.hbm [resolvable:$true] %s216
          %s218 = sshll.u32 %s207, 4
          %s219 = int_to_ptr.vmem [resolvable:$true] %s218
          %221 = dma.hbm_to_vmem [thread:$0]  %s217, 128, %s219, %s204
        $region36: #{tpu_custom_call.1} parent=31 // pred_fallthru
          _
      $region32: #{tpu_custom_call.1} parent=5 // pred_fallthru
        _
      %p222 = scmp.le.s32.totalorder 1, %s17
      %p223 = scmp.lt.s32.totalorder %s17, 3
      %p224 = pnand %p222, %p223
      %p225 = pneg %p224
      // Predicated region
      $region37: #{tpu_custom_call.1} parent=5 // pred_check
        _
      $region38: #{tpu_custom_call.1} parent=5 // pred_check_branch
        %227 = sbr.rel (%p224) target = $region40
      $region39: #{tpu_custom_call.1} parent=5 // pred_region
        %s228 = ssub.s32 %s17, 1
        %s229 = sand.u32 %s44, 1
        %s230 = scalar_lea.sflag [#allocation3], %s229
        %s231 = sand.u32 %s44, 1
        %s232 = smul.addr %s231, 8
        %s233 = scalar_lea.vmem [#allocation2], %s232
        // Predicated region
        $region41: #{tpu_custom_call.1} parent=39 // pred_check
          %p234 = pneg %p57
        $region42: #{tpu_custom_call.1} parent=39 // pred_check_branch
          %236 = sbr.rel (%p234) target = $region44
        $region43: #{tpu_custom_call.1} parent=39 // pred_region
          %238 = dma.done %s230, 128
        $region44: #{tpu_custom_call.1} parent=39 // pred_fallthru
          _
        %s239 = sand.u32 %s44, 1
        %s240 = scalar_lea.sflag [#allocation3], %s239
        %s241 = sand.u32 %s44, 1
        %s242 = smul.addr %s241, 8
        %s243 = scalar_lea.vmem [#allocation2], %s242
        %p244 = pneg %p57
        %p245 = pneg %p54
        %p246 = pneg %p78
        %p247 = pneg %p75
        %p248 = pneg %p99
        %p249 = pneg %p96
        %p250 = pneg %p120
        %p251 = pneg %p117
        %p252 = pneg %p141
        %p253 = pneg %p138
        %p254 = pneg %p169
        %p255 = pneg %p166
        %s256 = sand.u32 %s156, 1
        %s257 = scalar_lea.sflag [#allocation4], %s256
        %s258 = sand.u32 %s156, 1
        %s259 = smul.addr %s258, 8
        %s260 = scalar_lea.vmem [#allocation5], %s259
        %s261 = smul.u32 2, %s27
        %s262 = smul.u32 2, %s27
        %v263 = vld [vmem:[%s233] sm:$0xff]
        %265 = vst [vmem:[#allocation1] ss:$2 sm:$0xff] %v263
        %v266 = vld.sshfl [vmem:[#allocation1] sm:$0xff pattern:$0x75316420]
        %v267 = vld.sshfl [vmem:[#allocation1 + $0x8] sm:$0xff pattern:$0x75316420]
        %vm270 = vcmask 1043456
        %v271 = vsel %vm270, %v266, 0.0
        %v272 = vrot.slane %v271, 4
        %v273 = vadd.f32 %v271, %v272
        %v274 = vrot.slane %v273, 2
        %v275 = vadd.f32 %v273, %v274
        %v276 = vrot.slane %v275, 1
        %v277 = vadd.f32 %v275, %v276
        %v278 = vsel %vm270, %v267, 0.0
        %v279 = vrot.slane %v278, 4
        %v280 = vadd.f32 %v278, %v279
        %v281 = vrot.slane %v280, 2
        %v282 = vadd.f32 %v280, %v281
        %v283 = vrot.slane %v282, 1
        %v284 = vadd.f32 %v282, %v283
        %v285 = vrcp.pop 4.0
        %v286 = vmul.f32 4.0, %v285
        %v287 = vsub.f32 1.0, %v286
        %v288 = vmul.f32 %v285, %v287
        %v289 = vadd.f32 %v285, %v288
        %vm290 = vweird.f32 %v285
        %v291 = vsel %vm290, %v285, %v289
        %v292 = vmul.f32 %v277, %v291
        %v293 = vmul.f32 %v284, %v291
        %v296 = vrot.slane %v293, 4
        %v297 = vsel %vm270, %v292, %v296
        %v299 = vsub.f32 %v263, %v297
        %v300 = vmul.f32 %v299, %v299
        %302 = vst [vmem:[#allocation1] ss:$2 sm:$0xff] %v300
        %v303 = vld.sshfl [vmem:[#allocation1] sm:$0xff pattern:$0x75316420]
        %v304 = vld.sshfl [vmem:[#allocation1 + $0x8] sm:$0xff pattern:$0x75316420]
        %v307 = vsel %vm270, %v303, 0.0
        %v308 = vrot.slane %v307, 4
        %v309 = vadd.f32 %v307, %v308
        %v310 = vrot.slane %v309, 2
        %v311 = vadd.f32 %v309, %v310
        %v312 = vrot.slane %v311, 1
        %v313 = vadd.f32 %v311, %v312
        %v314 = vsel %vm270, %v304, 0.0
        %v315 = vrot.slane %v314, 4
        %v316 = vadd.f32 %v314, %v315
        %v317 = vrot.slane %v316, 2
        %v318 = vadd.f32 %v316, %v317
        %v319 = vrot.slane %v318, 1
        %v320 = vadd.f32 %v318, %v319
        %v321 = vmul.f32 %v313, %v291
        %v322 = vmul.f32 %v320, %v291
        %v323 = vrsqrt.pop %v321
        %v324 = vmul.f32 %v323, %v321
        %v325 = vmul.f32 %v324, %v323
        %v326 = vmul.f32 0.5, %v325
        %v327 = vsub.f32 1.5, %v326
        %v328 = vmul.f32 %v323, %v327
        %v329 = vmul.f32 %v321, %v328
        %vm330 = vcmp.eq.f32.partialorder %v321, inf
        %v331 = vsel %vm330, %v321, %v329
        %vm332 = vcmp.eq.f32.partialorder %v321, 0.0
        %v333 = vand.u32 %v321, 2147483648
        %v334 = vsel %vm332, %v333, %v331
        %v335 = vrsqrt.pop %v322
        %v336 = vmul.f32 %v335, %v322
        %v337 = vmul.f32 %v336, %v335
        %v338 = vmul.f32 0.5, %v337
        %v339 = vsub.f32 1.5, %v338
        %v340 = vmul.f32 %v335, %v339
        %v341 = vmul.f32 %v322, %v340
        %vm342 = vcmp.eq.f32.partialorder %v322, inf
        %v343 = vsel %vm342, %v322, %v341
        %vm344 = vcmp.eq.f32.partialorder %v322, 0.0
        %v345 = vand.u32 %v322, 2147483648
        %v346 = vsel %vm344, %v345, %v343
        %v347 = vadd.f32 %v334, 1e-05
        %v348 = vadd.f32 %v346, 1e-05
        %v349 = vrcp.pop %v347
        %v350 = vrcp.pop %v348
        %v353 = vrot.slane %v350, 4
        %v354 = vsel %vm270, %v349, %v353
        %v356 = vmul.f32 %v299, %v354
        %v357 = vld [vmem:[%s1] sm:$0xf]
        %359 = vset.pattern.permute.xlu0 0
        %360 = vperm.xlu0 %359, %v357
        %v361 = vpop.permute.xlu0 %360
        %v363 = vunpack.c.l.s4 839922192
        %v364 = vunpack.c.0.s8 %v363
        %v365 = vperm.slane %v361, %v364
        %v367 = vmul.f32 %v356, %v365
        %v368 = vld [vmem:[%s2] sm:$0xf]
        %370 = vset.pattern.permute.xlu0 0
        %371 = vperm.xlu0 %370, %v368
        %v372 = vpop.permute.xlu0 %371
        %v374 = vunpack.c.l.s4 839922192
        %v375 = vunpack.c.0.s8 %v374
        %v376 = vperm.slane %v372, %v375
        %v378 = vadd.f32 %v367, %v376
        %v379 = vld [vmem:[%s3] sm:$0xf]
        %v380 = vld [vmem:[%s4] sm:$0xf]
        %382 = vset.pattern.permute.xlu0 0
        %383 = vperm.xlu0 %382, %v380
        %v384 = vpop.permute.xlu0 %383
        %387 = vst [vmem:[#allocation1] ss:$2 sm:$0xff] %v378
        %v388 = vld.sshfl [vmem:[#allocation1] sm:$0xff pattern:$0x75316420]
        %v389 = vld.sshfl [vmem:[#allocation1 + $0x8] sm:$0xff pattern:$0x75316420]
        %vm390 = vcmask 31744
        %v392 = vsel %vm390, %v379, 0
        %v394 = vsel %vm270, %v388, 0
        %v396 = vsel %vm270, %v389, 0
        %398 = vmatpush.msra.mxu0 0.0
        %399 = vmatpush.msra.mxu0 0.0
        %400 = vmatpush.msra.mxu0 0.0
        %401 = vmatpush.msra.mxu0 0.0
        %402 = vmatpush.msra.mxu0 0.0
        %403 = vmatpush.msra.mxu0 0.0
        %404 = vmatpush.msra.mxu0 0.0
        %405 = vmatpush.msra.mxu0 0.0
        %406 = vmatpush.msra.mxu0 0.0
        %407 = vmatpush.msra.mxu0 0.0
        %408 = vmatpush.msra.mxu0 0.0
        %409 = vmatpush.msra.mxu0 0.0
        %410 = vmatpush.msra.mxu0 0.0
        %411 = vmatpush.msra.mxu0 0.0
        %412 = vmatpush.msra.mxu0 0.0
        %413 = vmatpush.msra.mxu0 %v394
        %414 = vmatmul.f32.gmra.mxu0 %v392
        %v415 = vpop.f32.mrf.mxu0
        %v416 = vadd.f32 %v384, %v415
        %417 = vdwg.mxu0
        %418 = vmatpush.msra.mxu0 0.0
        %419 = vmatpush.msra.mxu0 0.0
        %420 = vmatpush.msra.mxu0 0.0
        %421 = vmatpush.msra.mxu0 0.0
        %422 = vmatpush.msra.mxu0 0.0
        %423 = vmatpush.msra.mxu0 0.0
        %424 = vmatpush.msra.mxu0 0.0
        %425 = vmatpush.msra.mxu0 0.0
        %426 = vmatpush.msra.mxu0 0.0
        %427 = vmatpush.msra.mxu0 0.0
        %428 = vmatpush.msra.mxu0 0.0
        %429 = vmatpush.msra.mxu0 0.0
        %430 = vmatpush.msra.mxu0 0.0
        %431 = vmatpush.msra.mxu0 0.0
        %432 = vmatpush.msra.mxu0 0.0
        %433 = vmatpush.msra.mxu0 %v396
        %434 = vmatmul.f32.gmra.mxu0 %v392
        %v435 = vpop.f32.mrf.mxu0
        %v436 = vadd.f32 %v384, %v435
        %437 = vdwg.mxu0
        %v440 = vrot.slane %v436, 4
        %v441 = vsel %vm270, %v416, %v440
        %443 = vst [vmem:[%s260] sm:$0xff] %v441
        %s444 = sand.u32 %s156, 1
        %s445 = scalar_lea.sflag [#allocation4], %s444
        %s446 = sand.u32 %s156, 1
        %s447 = smul.addr %s446, 8
        %s448 = scalar_lea.vmem [#allocation5], %s447
        // Predicated region
        $region45: #{tpu_custom_call.1} parent=39 // pred_check
          %p449 = pneg %p166
        $region46: #{tpu_custom_call.1} parent=39 // pred_check_branch
          %451 = sbr.rel (%p449) target = $region48
        $region47: #{tpu_custom_call.1} parent=39 // pred_region
          %s452 = smul.u32 2, %s27
          %454 = vsyncadd %s445, 0
          %s455 = smul.addr %s26, 2
          %s456 = sadd.s32 %s452, %s455
          %s457 = smul.addr %s456, 4
          %s458 = scalar_lea.hbm %s5, %s457
          %s460 = sshll.u32 %s448, 4
          %s461 = int_to_ptr.vmem [resolvable:$true] %s460
          %s462 = sshll.u32 %s458, 4
          %s463 = int_to_ptr.hbm [resolvable:$true] %s462
          %465 = dma.vmem_to_hbm [thread:$0]  %s461, 128, %s463, %s445
        $region48: #{tpu_custom_call.1} parent=39 // pred_fallthru
          _
      $region40: #{tpu_custom_call.1} parent=5 // pred_fallthru
        _
      %p466 = scmp.le.s32.totalorder 2, %s17
      // Predicated region
      $region49: #{tpu_custom_call.1} parent=5 // pred_check
        %p467 = pneg %p466
      $region50: #{tpu_custom_call.1} parent=5 // pred_check_branch
        %469 = sbr.rel (%p467) target = $region52
      $region51: #{tpu_custom_call.1} parent=5 // pred_region
        %s470 = ssub.s32 %s17, 2
        // Predicated region
        $region53: #{tpu_custom_call.1} parent=51 // pred_check
          %p471 = pneg %p172
        $region54: #{tpu_custom_call.1} parent=51 // pred_check_branch
          %473 = sbr.rel (%p471) target = $region56
        $region55: #{tpu_custom_call.1} parent=51 // pred_region
          %s474 = sand.u32 %s157, 1
          %s475 = scalar_lea.sflag [#allocation4], %s474
          %s476 = sand.u32 %s157, 1
          %s477 = smul.addr %s476, 8
          %s478 = scalar_lea.vmem [#allocation5], %s477
          %480 = dma.done %s475, 128
        $region56: #{tpu_custom_call.1} parent=51 // pred_fallthru
          _
      $region52: #{tpu_custom_call.1} parent=5 // pred_fallthru
        _
    $region6: #{tpu_custom_call.1} parent=1 // loop_footer
      %s21 = sadd.s32 1, %s17
    $region7: #{tpu_custom_call.1} parent=1 // loop_footer_branch
      %16 = sbr.rel target = $region3
    $region8: #{tpu_custom_call.1} parent=1 // loop_exit
      _
    %481 = vsyncpa [#allocation3], 1
    %s482 = scalar_lea.sflag [#allocation3], 1
    %483 = vsyncpa %s482, 1
    %484 = vsyncpa [#allocation4], 1
    %s485 = scalar_lea.sflag [#allocation4], 1
    %486 = vsyncpa %s485, 1

</llo_original>
